<compile_context>
chip_gen: v7x
topology: tpu7x:2x2x1
jax: 0.10.0
libtpu: 0.0.40
codegen_flags: <defaults>
</compile_context>

<pallas_src>
import jax
import jax.numpy as jnp
import numpy as np
from jax.experimental import pallas as pl
from jax.experimental.pallas import tpu as pltpu

HIDDEN = 400  # fixed by the PyTorch module (nn.Linear(input_dim, 400))


def modular_encoder_kernel(idx_ref, x_ref, w1_ref, b1_ref, w2_ref, b2_ref, out_ref):
    """One grid step = one submodule m.

    idx_ref : VMEM (Bp, 1) int32     -- per-sample module index (-1 for pad rows)
    x_ref   : VMEM (Bp, D_in)        -- full batch, same block every step
    w1_ref  : VMEM (D_in, Hp)        -- module m's first-layer weights (module dim squeezed)
    b1_ref  : VMEM (1, Hp)
    w2_ref  : VMEM (Hp, Op)          -- Op = 2L padded to a multiple of 128
    b2_ref  : VMEM (1, Op)
    out_ref : VMEM (Bp, Op)          -- resident across the module grid axis
    """
    m = pl.program_id(0)

    @pl.when(m == 0)
    def _init():
        out_ref[...] = jnp.zeros_like(out_ref)

    # Full-batch first layer for module m (one MXU push instead of B pushes).
    h = jnp.dot(x_ref[...], w1_ref[...], preferred_element_type=jnp.float32) + b1_ref[...]
    h = jnp.maximum(h, 0.0)  # ReLU (zero-padded hidden columns stay exactly 0)

    # Second layer; zero-padded rows of w2 / lanes of b2 contribute nothing.
    o = jnp.dot(h, w2_ref[...], preferred_element_type=jnp.float32) + b2_ref[...]

    # Keep only the rows assigned to this module (full-tile unmasked store).
    mask = idx_ref[...] == m                      # (Bp, 1) bool, broadcasts over Op lanes
    out_ref[...] = jnp.where(mask, o, out_ref[...])


def modular_encoder(x, angle_idx, w1, b1, w2, b2):
    """x: (B, D_in) f32; angle_idx: (B,) int; w1: (M, D_in, H); b1: (M, H);
    w2: (M, H, 2L); b2: (M, 2L).  Returns (z_mu, z_logvar), each (B, L)."""
    B, D_in = x.shape
    M, _, H = w1.shape
    two_L = w2.shape[-1]
    L = two_L // 2

    def rup(n, k):
        return ((n + k - 1) // k) * k

    Hp = rup(H, 128)      # hidden: 400 -> 512
    Op = rup(two_L, 128)  # output lanes: 2L -> multiple of 128 (unmasked vst)
    Bp = rup(B, 8)        # batch: multiple of 8 sublanes

    # Zero-pad weights/biases; pad region contributes exactly 0 to the result.
    if Hp != H:
        w1 = jnp.pad(w1, ((0, 0), (0, 0), (0, Hp - H)))
        b1 = jnp.pad(b1, ((0, 0), (0, Hp - H)))
        w2 = jnp.pad(w2, ((0, 0), (0, Hp - H), (0, 0)))
    if Op != two_L:
        w2 = jnp.pad(w2, ((0, 0), (0, 0), (0, Op - two_L)))
        b2 = jnp.pad(b2, ((0, 0), (0, Op - two_L)))

    angle_idx = angle_idx.astype(jnp.int32)
    if Bp != B:
        x = jnp.pad(x, ((0, Bp - B), (0, 0)))
        # Pad rows get index -1 -> never selected by any module; sliced off below.
        angle_idx = jnp.pad(angle_idx, ((0, Bp - B),), constant_values=-1)

    # Biases reshaped to (M, 1, *) so the per-module block has benign (1, *)
    # trailing dims; angle_idx as (Bp, 1) int32 column for the vectorized mask.
    b1 = b1.reshape(M, 1, Hp)
    b2 = b2.reshape(M, 1, Op)
    idx = angle_idx.reshape(Bp, 1)

    # TODO(synk): for bf16-capable deployments, cast x/w1/w2 to bfloat16 (keep
    # f32 accumulation + bias) to halve weight DMA traffic; kept f32 here to
    # match the PyTorch reference numerics.
    out = pl.pallas_call(
        modular_encoder_kernel,
        out_shape=jax.ShapeDtypeStruct((Bp, Op), jnp.float32),
        grid_spec=pltpu.PrefetchScalarGridSpec(
            num_scalar_prefetch=0,
            grid=(M,),
            in_specs=[
                pl.BlockSpec((Bp, 1), lambda m: (0, 0)),              # angle_idx
                pl.BlockSpec((Bp, D_in), lambda m: (0, 0)),           # x (same block each step)
                pl.BlockSpec((None, D_in, Hp), lambda m: (m, 0, 0)),  # w1[m]
                pl.BlockSpec((None, 1, Hp), lambda m: (m, 0, 0)),     # b1[m]
                pl.BlockSpec((None, Hp, Op), lambda m: (m, 0, 0)),    # w2[m]
                pl.BlockSpec((None, 1, Op), lambda m: (m, 0, 0)),     # b2[m]
            ],
            out_specs=pl.BlockSpec((Bp, Op), lambda m: (0, 0)),       # resident accumulator
        ),
        compiler_params=pltpu.CompilerParams(
            # Module axis merges into a resident output -> must be "arbitrary".
            dimension_semantics=("arbitrary",),
        ),
    )(idx, x, w1, b1, w2, b2)

    return out[:B, :L], out[:B, L:two_L]


def init_params(key, input_dim, latent_dim, num_modules):
    """Deterministic init mimicking PyTorch nn.Linear default (U(-1/sqrt(fan_in), +1/sqrt(fan_in)))."""
    k1, k2, k3, k4 = jax.random.split(key, 4)
    bnd1 = 1.0 / np.sqrt(input_dim)
    bnd2 = 1.0 / np.sqrt(HIDDEN)
    w1 = jax.random.uniform(k1, (num_modules, input_dim, HIDDEN), jnp.float32, -bnd1, bnd1)
    b1 = jax.random.uniform(k2, (num_modules, HIDDEN), jnp.float32, -bnd1, bnd1)
    w2 = jax.random.uniform(k3, (num_modules, HIDDEN, 2 * latent_dim), jnp.float32, -bnd2, bnd2)
    b2 = jax.random.uniform(k4, (num_modules, 2 * latent_dim), jnp.float32, -bnd2, bnd2)
    return w1, b1, w2, b2


def reference(x, angle_idx, w1, b1, w2, b2):
    """Pure-JAX reference matching the PyTorch per-sample loop."""
    latent_dim = w2.shape[-1] // 2
    mus, lvs = [], []
    for i in range(x.shape[0]):
        m = int(angle_idx[i])
        h = jnp.maximum(x[i:i + 1] @ w1[m] + b1[m], 0.0)
        o = h @ w2[m] + b2[m]
        mus.append(o[:, :latent_dim])
        lvs.append(o[:, latent_dim:])
    return jnp.concatenate(mus, axis=0), jnp.concatenate(lvs, axis=0)


if __name__ == "__main__":
    input_dim = 64
    latent_dim = 8
    num_modules = 3
    B = 4

    key = jax.random.PRNGKey(0)
    kx, kidx, kp = jax.random.split(key, 3)

    x = jax.random.normal(kx, (B, input_dim), jnp.float32)
    angle_idx = jax.random.randint(kidx, (B,), 0, num_modules, jnp.int32)
    w1, b1, w2, b2 = init_params(kp, input_dim, latent_dim, num_modules)

    z_mu, z_logvar = modular_encoder(x, angle_idx, w1, b1, w2, b2)
    jax.block_until_ready((z_mu, z_logvar))

    ref_mu, ref_lv = reference(x, angle_idx, w1, b1, w2, b2)
    np.testing.assert_allclose(np.asarray(z_mu), np.asarray(ref_mu), rtol=1e-4, atol=1e-4)
    np.testing.assert_allclose(np.asarray(z_logvar), np.asarray(ref_lv), rtol=1e-4, atol=1e-4)

    print("KERNEL_OK")
</pallas_src>

<mosaic_0001>
module attributes {stable_mosaic.version = 11 : i64} {
  func.func @modular_encoder_kernel(%arg0: i32, %arg1: memref<8x1xi32, #tpu.memory_space<vmem>>, %arg2: memref<8x64xf32, #tpu.memory_space<vmem>>, %arg3: memref<1x64x512xf32, #tpu.memory_space<vmem>>, %arg4: memref<1x1x512xf32, #tpu.memory_space<vmem>>, %arg5: memref<1x512x128xf32, #tpu.memory_space<vmem>>, %arg6: memref<1x1x128xf32, #tpu.memory_space<vmem>>, %arg7: memref<8x128xf32, #tpu.memory_space<vmem>>) attributes {dimension_semantics = [#tpu.dimension_semantics<arbitrary>], iteration_bounds = array<i64: 3>, scalar_prefetch = 0 : i64, scratch_operands = 0 : i64, tpu.core_type = #tpu.core_type<tc>, window_params = [{pipeline_mode = #tpu.pipeline_mode<synchronous>, transform_indices = @transform_0, window_bounds = array<i64: 8, 1>}, {pipeline_mode = #tpu.pipeline_mode<synchronous>, transform_indices = @transform_1, window_bounds = array<i64: 8, 64>}, {transform_indices = @transform_2, window_bounds = array<i64: 1, 64, 512>}, {transform_indices = @transform_3, window_bounds = array<i64: 1, 1, 512>}, {transform_indices = @transform_4, window_bounds = array<i64: 1, 512, 128>}, {transform_indices = @transform_5, window_bounds = array<i64: 1, 1, 128>}, {pipeline_mode = #tpu.pipeline_mode<synchronous>, transform_indices = @transform_6, window_bounds = array<i64: 8, 128>}]} {
    %c0_i32 = arith.constant 0 : i32
    %0 = arith.cmpi eq, %arg0, %c0_i32 : i32
    %1 = arith.extui %0 : i1 to i32
    %c0_i32_0 = arith.constant 0 : i32
    %2 = arith.cmpi ne, %1, %c0_i32_0 : i32
    scf.if %2 {
      %cst_22 = arith.constant 0.000000e+00 : f32
      %28 = vector.broadcast %cst_22 : f32 to vector<8x128xf32>
      %c0_23 = arith.constant 0 : index
      %c0_24 = arith.constant 0 : index
      %29 = vector.load %arg7[%c0_23, %c0_24] : memref<8x128xf32, #tpu.memory_space<vmem>>, vector<8x128xf32>
      tpu.vector_store %arg7[%c0_23, %c0_24], %28 {strides = array<i32>} : memref<8x128xf32, #tpu.memory_space<vmem>>, vector<8x128xf32>,
    } else {
    }
    %c0 = arith.constant 0 : index
    %c0_1 = arith.constant 0 : index
    %3 = vector.load %arg2[%c0, %c0_1] : memref<8x64xf32, #tpu.memory_space<vmem>>, vector<8x64xf32>
    %c0_2 = arith.constant 0 : index
    %c0_3 = arith.constant 0 : index
    %c0_4 = arith.constant 0 : index
    %4 = vector.load %arg3[%c0_2, %c0_3, %c0_4] : memref<1x64x512xf32, #tpu.memory_space<vmem>>, vector<1x64x512xf32>
    %5 = vector.shape_cast %4 : vector<1x64x512xf32> to vector<64x512xf32>
    %cst = arith.constant dense<0.000000e+00> : vector<8x512xf32>
    %6 = tpu.matmul %3, %5, %cst {dimension_numbers = #tpu.dot_dimension_numbers<[1], [0], [0], [1], [0, 0, 1, 1], [], []>} : vector<8x64xf32>, vector<64x512xf32>, vector<8x512xf32> -> vector<8x512xf32>
    %c0_5 = arith.constant 0 : index
    %c0_6 = arith.constant 0 : index
    %c0_7 = arith.constant 0 : index
    %7 = vector.load %arg4[%c0_5, %c0_6, %c0_7] : memref<1x1x512xf32, #tpu.memory_space<vmem>>, vector<1x1x512xf32>
    %8 = vector.shape_cast %7 : vector<1x1x512xf32> to vector<1x512xf32>
    %9 = vector.broadcast %8 : vector<1x512xf32> to vector<8x512xf32>
    %10 = arith.addf %6, %9 : vector<8x512xf32>
    %cst_8 = arith.constant 0.000000e+00 : f32
    %11 = vector.broadcast %cst_8 : f32 to vector<8x512xf32>
    %12 = arith.maximumf %10, %11 : vector<8x512xf32>
    %c0_9 = arith.constant 0 : index
    %c0_10 = arith.constant 0 : index
    %c0_11 = arith.constant 0 : index
    %13 = vector.load %arg5[%c0_9, %c0_10, %c0_11] : memref<1x512x128xf32, #tpu.memory_space<vmem>>, vector<1x512x128xf32>
    %14 = vector.shape_cast %13 : vector<1x512x128xf32> to vector<512x128xf32>
    %cst_12 = arith.constant dense<0.000000e+00> : vector<8x128xf32>
    %15 = tpu.matmul %12, %14, %cst_12 {dimension_numbers = #tpu.dot_dimension_numbers<[1], [0], [0], [1], [0, 0, 1, 1], [], []>} : vector<8x512xf32>, vector<512x128xf32>, vector<8x128xf32> -> vector<8x128xf32>
    %c0_13 = arith.constant 0 : index
    %c0_14 = arith.constant 0 : index
    %c0_15 = arith.constant 0 : index
    %16 = vector.load %arg6[%c0_13, %c0_14, %c0_15] : memref<1x1x128xf32, #tpu.memory_space<vmem>>, vector<1x1x128xf32>
    %17 = vector.shape_cast %16 : vector<1x1x128xf32> to vector<1x128xf32>
    %18 = vector.broadcast %17 : vector<1x128xf32> to vector<8x128xf32>
    %19 = arith.addf %15, %18 : vector<8x128xf32>
    %c0_16 = arith.constant 0 : index
    %c0_17 = arith.constant 0 : index
    %20 = vector.load %arg1[%c0_16, %c0_17] : memref<8x1xi32, #tpu.memory_space<vmem>>, vector<8x1xi32>
    %21 = vector.broadcast %arg0 : i32 to vector<8x1xi32>
    %22 = arith.cmpi eq, %20, %21 : vector<8x1xi32>
    %c0_18 = arith.constant 0 : index
    %c0_19 = arith.constant 0 : index
    %23 = vector.load %arg7[%c0_18, %c0_19] : memref<8x128xf32, #tpu.memory_space<vmem>>, vector<8x128xf32>
    %24 = vector.shape_cast %22 : vector<8x1xi1> to vector<8x1xi1>
    %25 = vector.broadcast %24 : vector<8x1xi1> to vector<8x128xi1>
    %26 = arith.select %25, %19, %23 : vector<8x128xi1>, vector<8x128xf32>
    %c0_20 = arith.constant 0 : index
    %c0_21 = arith.constant 0 : index
    %27 = vector.load %arg7[%c0_20, %c0_21] : memref<8x128xf32, #tpu.memory_space<vmem>>, vector<8x128xf32>
    tpu.vector_store %arg7[%c0_20, %c0_21], %26 {strides = array<i32>} : memref<8x128xf32, #tpu.memory_space<vmem>>, vector<8x128xf32>,
    return
  }
  func.func @transform_0(%arg0: i32) -> (i32, i32) {
    %c0_i32 = arith.constant 0 : i32
    %c0_i32_0 = arith.constant 0 : i32
    %c0_i32_1 = arith.constant 0 : i32
    return %c0_i32, %c0_i32_0 : i32, i32
  }
  func.func @transform_1(%arg0: i32) -> (i32, i32) {
    %c0_i32 = arith.constant 0 : i32
    %c0_i32_0 = arith.constant 0 : i32
    %c0_i32_1 = arith.constant 0 : i32
    return %c0_i32, %c0_i32_0 : i32, i32
  }
  func.func @transform_2(%arg0: i32) -> (i32, i32, i32) {
    %c0_i32 = arith.constant 0 : i32
    %c0_i32_0 = arith.constant 0 : i32
    %c0_i32_1 = arith.constant 0 : i32
    return %arg0, %c0_i32, %c0_i32_0 : i32, i32, i32
  }
  func.func @transform_3(%arg0: i32) -> (i32, i32, i32) {
    %c0_i32 = arith.constant 0 : i32
    %c0_i32_0 = arith.constant 0 : i32
    %c0_i32_1 = arith.constant 0 : i32
    return %arg0, %c0_i32, %c0_i32_0 : i32, i32, i32
  }
  func.func @transform_4(%arg0: i32) -> (i32, i32, i32) {
    %c0_i32 = arith.constant 0 : i32
    %c0_i32_0 = arith.constant 0 : i32
    %c0_i32_1 = arith.constant 0 : i32
    return %arg0, %c0_i32, %c0_i32_0 : i32, i32, i32
  }
  func.func @transform_5(%arg0: i32) -> (i32, i32, i32) {
    %c0_i32 = arith.constant 0 : i32
    %c0_i32_0 = arith.constant 0 : i32
    %c0_i32_1 = arith.constant 0 : i32
    return %arg0, %c0_i32, %c0_i32_0 : i32, i32, i32
  }
  func.func @transform_6(%arg0: i32) -> (i32, i32) {
    %c0_i32 = arith.constant 0 : i32
    %c0_i32_0 = arith.constant 0 : i32
    %c0_i32_1 = arith.constant 0 : i32
    return %c0_i32, %c0_i32_0 : i32, i32
  }
}

</mosaic_0001>

<llo_original>
// kernel: tpu_custom_call.1
$region0: #{tpu_custom_call.1}
  #allocation0 [shape = 'u32[]', space=smem, size = 0x4, offset = 0x4, fixed_abs, tag = 'smem constant byte address 0x4 - core index']
  #allocation1 [shape = 'u32[144,128]{1,0:T(1,128)}', space=vmem, size = 0x12000, scoped, tag = 'internal scratch']
  %s0 = inlined_call_operand.vmem [shape: s32[8,1], index: 0, kind: input, shape index: {}]
  %s1 = inlined_call_operand.vmem [shape: f32[8,64], index: 1, kind: input, shape index: {}]
  %s2 = inlined_call_operand.hbm [shape: f32[3,64,512], index: 2, kind: input, shape index: {}]
  %s3 = inlined_call_operand.vmem [shape: f32[3,1,512], index: 3, kind: input, shape index: {}]
  %s4 = inlined_call_operand.hbm [shape: f32[3,512,128], index: 4, kind: input, shape index: {}]
  %s5 = inlined_call_operand.vmem [shape: f32[3,1,128], index: 5, kind: input, shape index: {}]
  %s6 = inlined_call_operand.hbm [shape: f32[8,128], index: 6, kind: output, shape index: {}]
  %s7 = sld [smem:[#allocation0]]
  $region69: #{tpu_custom_call.1} parent=0
    _
  %s9 = ssub.s32 1, %s7
  %s10 = scalar_select 0, %s9, %s7
  $region1: #{tpu_custom_call.1} parent=0
    #allocation2 [shape = 'u8[262144]{0}', space=vmem, size = 0x40000, scoped, tag = 'input window, operand 2']
    #allocation3 [shape = 's32[2]{0}', space=sflag, size = 0x8, scoped, tag = 'scoped memory for tpu_custom_call.1']
    #allocation4 [shape = 's32[2]{0}', space=sflag, size = 0x8, scoped, tag = 'scoped memory for tpu_custom_call.1']
    #allocation5 [shape = 'u8[524288]{0}', space=vmem, size = 0x80000, scoped, tag = 'input window, operand 4']
    #allocation6 [shape = 's32[2]{0}', space=sflag, size = 0x8, scoped, tag = 'scoped memory for tpu_custom_call.1']
    #allocation7 [shape = 'u8[4096]{0}', space=vmem, size = 0x1000, scoped, tag = 'output window, operand 0, single buffered']
    %11 = vsyncpa [#allocation3], 0
    %s12 = scalar_lea.sflag [#allocation3], 1
    %13 = vsyncpa %s12, 0
    %14 = vsyncpa [#allocation6], 0
    %s15 = scalar_lea.sflag [#allocation6], 1
    %16 = vsyncpa %s15, 0
    %17 = vsyncpa [#allocation4], 0
    loop: start=0, step=1, limit=5
    $region2: #{tpu_custom_call.1} parent=1 // loop_pre_header
      _
    $region3: #{tpu_custom_call.1} parent=1 // loop_header
      %s19 = sphi 0, %s23
      %p20 = scmp.ge.s32.totalorder %s19, 5
      %s27 = sphi 0, %s27
      %s29 = sphi 0, %s27
      %s30 = sphi 0, %s29
      %s44 = sphi 0, %s30
      %s48 = sphi 0, %s48
      %s50 = sphi 0, %s48
      %s51 = sphi 0, %s50
      %s65 = sphi 0, %s51
      %s71 = sphi 0, %s73
      %s74 = sphi 0, %s71
      %s75 = sphi 0, %s74
      %s91 = sphi 0, %s75
      %s97 = sphi 0, %s99
      %s100 = sphi 0, %s97
      %s101 = sphi 0, %s100
      %s117 = sphi 0, %s101
      %s123 = sphi 0, %s125
      %s126 = sphi 0, %s123
      %s127 = sphi 0, %s126
      %s143 = sphi 0, %s127
      %s149 = sphi 0, %s151
      %s152 = sphi 0, %s149
      %s153 = sphi 0, %s152
      %s169 = sphi 0, %s153
      %s173 = sphi 0, %s173
      %s175 = sphi 0, %s173
      %s176 = sphi 0, %s175
      %s190 = sphi 0, %s176
    $region4: #{tpu_custom_call.1} parent=1 // loop_header_branch
      %22 = sbr.rel (%p20) target = $region8
    $region5: #{tpu_custom_call.1} parent=1 // loop_body
      %s24 = ssub.s32 %s19, 1
      %s25 = ssub.s32 %s19, 2
      %s26 = sadd.s32 %s19, 1
      %s28 = sadd.s32 %s27, 1
      %p31 = scmp.eq.s32.totalorder %s19, 2
      %p32 = scmp.ne.s32.totalorder %s27, %s29
      %p33 = scmp.eq.s32.totalorder %s19, 0
      %p34 = por %p32, %p33
      %p35 = scmp.ne.s32.totalorder %s27, %s29
      %p36 = scmp.eq.s32.totalorder %s24, 2
      %p37 = por %p35, %p36
      %p38 = scmp.ne.s32.totalorder %s29, %s30
      %p39 = scmp.eq.s32.totalorder %s24, 0
      %p40 = por %p38, %p39
      %p41 = scmp.ne.s32.totalorder %s29, %s30
      %p42 = scmp.eq.s32.totalorder %s25, 2
      %p43 = por %p41, %p42
      %p45 = scmp.ne.s32.totalorder %s30, %s44
      %p46 = scmp.eq.s32.totalorder %s25, 0
      %p47 = por %p45, %p46
      %s49 = sadd.s32 %s48, 1
      %p52 = scmp.eq.s32.totalorder %s19, 2
      %p53 = scmp.ne.s32.totalorder %s48, %s50
      %p54 = scmp.eq.s32.totalorder %s19, 0
      %p55 = por %p53, %p54
      %p56 = scmp.ne.s32.totalorder %s48, %s50
      %p57 = scmp.eq.s32.totalorder %s24, 2
      %p58 = por %p56, %p57
      %p59 = scmp.ne.s32.totalorder %s50, %s51
      %p60 = scmp.eq.s32.totalorder %s24, 0
      %p61 = por %p59, %p60
      %p62 = scmp.ne.s32.totalorder %s50, %s51
      %p63 = scmp.eq.s32.totalorder %s25, 2
      %p64 = por %p62, %p63
      %p66 = scmp.ne.s32.totalorder %s51, %s65
      %p67 = scmp.eq.s32.totalorder %s25, 0
      %p68 = por %p66, %p67
      %s69 = ssub.s32 %s19, %s26
      %p70 = scmp.eq.s32.totalorder %s69, 0
      %s72 = sadd.s32 %s71, 1
      %s73 = scalar_select %p70, %s71, %s72
      %p76 = pneg %p70
      %p77 = scmp.eq.s32.totalorder %s19, 2
      %p78 = por %p76, %p77
      %p79 = scmp.ne.s32.totalorder %s71, %s74
      %p80 = scmp.eq.s32.totalorder %s19, 0
      %p81 = por %p79, %p80
      %p82 = scmp.ne.s32.totalorder %s71, %s74
      %p83 = scmp.eq.s32.totalorder %s24, 2
      %p84 = por %p82, %p83
      %p85 = scmp.ne.s32.totalorder %s74, %s75
      %p86 = scmp.eq.s32.totalorder %s24, 0
      %p87 = por %p85, %p86
      %p88 = scmp.ne.s32.totalorder %s74, %s75
      %p89 = scmp.eq.s32.totalorder %s25, 2
      %p90 = por %p88, %p89
      %p92 = scmp.ne.s32.totalorder %s75, %s91
      %p93 = scmp.eq.s32.totalorder %s25, 0
      %p94 = por %p92, %p93
      %s95 = ssub.s32 %s19, %s26
      %p96 = scmp.eq.s32.totalorder %s95, 0
      %s98 = sadd.s32 %s97, 1
      %s99 = scalar_select %p96, %s97, %s98
      %p102 = pneg %p96
      %p103 = scmp.eq.s32.totalorder %s19, 2
      %p104 = por %p102, %p103
      %p105 = scmp.ne.s32.totalorder %s97, %s100
      %p106 = scmp.eq.s32.totalorder %s19, 0
      %p107 = por %p105, %p106
      %p108 = scmp.ne.s32.totalorder %s97, %s100
      %p109 = scmp.eq.s32.totalorder %s24, 2
      %p110 = por %p108, %p109
      %p111 = scmp.ne.s32.totalorder %s100, %s101
      %p112 = scmp.eq.s32.totalorder %s24, 0
      %p113 = por %p111, %p112
      %p114 = scmp.ne.s32.totalorder %s100, %s101
      %p115 = scmp.eq.s32.totalorder %s25, 2
      %p116 = por %p114, %p115
      %p118 = scmp.ne.s32.totalorder %s101, %s117
      %p119 = scmp.eq.s32.totalorder %s25, 0
      %p120 = por %p118, %p119
      %s121 = ssub.s32 %s19, %s26
      %p122 = scmp.eq.s32.totalorder %s121, 0
      %s124 = sadd.s32 %s123, 1
      %s125 = scalar_select %p122, %s123, %s124
      %p128 = pneg %p122
      %p129 = scmp.eq.s32.totalorder %s19, 2
      %p130 = por %p128, %p129
      %p131 = scmp.ne.s32.totalorder %s123, %s126
      %p132 = scmp.eq.s32.totalorder %s19, 0
      %p133 = por %p131, %p132
      %p134 = scmp.ne.s32.totalorder %s123, %s126
      %p135 = scmp.eq.s32.totalorder %s24, 2
      %p136 = por %p134, %p135
      %p137 = scmp.ne.s32.totalorder %s126, %s127
      %p138 = scmp.eq.s32.totalorder %s24, 0
      %p139 = por %p137, %p138
      %p140 = scmp.ne.s32.totalorder %s126, %s127
      %p141 = scmp.eq.s32.totalorder %s25, 2
      %p142 = por %p140, %p141
      %p144 = scmp.ne.s32.totalorder %s127, %s143
      %p145 = scmp.eq.s32.totalorder %s25, 0
      %p146 = por %p144, %p145
      %s147 = ssub.s32 %s19, %s26
      %p148 = scmp.eq.s32.totalorder %s147, 0
      %s150 = sadd.s32 %s149, 1
      %s151 = scalar_select %p148, %s149, %s150
      %p154 = pneg %p148
      %p155 = scmp.eq.s32.totalorder %s19, 2
      %p156 = por %p154, %p155
      %p157 = scmp.ne.s32.totalorder %s149, %s152
      %p158 = scmp.eq.s32.totalorder %s19, 0
      %p159 = por %p157, %p158
      %p160 = scmp.ne.s32.totalorder %s149, %s152
      %p161 = scmp.eq.s32.totalorder %s24, 2
      %p162 = por %p160, %p161
      %p163 = scmp.ne.s32.totalorder %s152, %s153
      %p164 = scmp.eq.s32.totalorder %s24, 0
      %p165 = por %p163, %p164
      %p166 = scmp.ne.s32.totalorder %s152, %s153
      %p167 = scmp.eq.s32.totalorder %s25, 2
      %p168 = por %p166, %p167
      %p170 = scmp.ne.s32.totalorder %s153, %s169
      %p171 = scmp.eq.s32.totalorder %s25, 0
      %p172 = por %p170, %p171
      %s174 = sadd.s32 %s173, 1
      %p177 = scmp.eq.s32.totalorder %s19, 2
      %p178 = scmp.ne.s32.totalorder %s173, %s175
      %p179 = scmp.eq.s32.totalorder %s19, 0
      %p180 = por %p178, %p179
      %p181 = scmp.ne.s32.totalorder %s173, %s175
      %p182 = scmp.eq.s32.totalorder %s24, 2
      %p183 = por %p181, %p182
      %p184 = scmp.ne.s32.totalorder %s175, %s176
      %p185 = scmp.eq.s32.totalorder %s24, 0
      %p186 = por %p184, %p185
      %p187 = scmp.ne.s32.totalorder %s175, %s176
      %p188 = scmp.eq.s32.totalorder %s25, 2
      %p189 = por %p187, %p188
      %p191 = scmp.ne.s32.totalorder %s176, %s190
      %p192 = scmp.eq.s32.totalorder %s25, 0
      %p193 = por %p191, %p192
      %p194 = scmp.le.s32.totalorder 1, %s19
      %p195 = scmp.lt.s32.totalorder %s19, 4
      %p196 = pnand %p194, %p195
      %p197 = pneg %p196
      // Predicated region
      $region9: #{tpu_custom_call.1} parent=5 // pred_check
        _
      $region10: #{tpu_custom_call.1} parent=5 // pred_check_branch
        %199 = sbr.rel (%p196) target = $region12
      $region11: #{tpu_custom_call.1} parent=5 // pred_region
        %s200 = ssub.s32 %s19, 1
        // Predicated region
        $region13: #{tpu_custom_call.1} parent=11 // pred_check
          %p201 = pneg %p40
        $region14: #{tpu_custom_call.1} parent=11 // pred_check_branch
          %203 = sbr.rel (%p201) target = $region16
        $region15: #{tpu_custom_call.1} parent=11 // pred_region
          _
        $region16: #{tpu_custom_call.1} parent=11 // pred_fallthru
          _
        // Predicated region
        $region17: #{tpu_custom_call.1} parent=11 // pred_check
          %p204 = pneg %p61
        $region18: #{tpu_custom_call.1} parent=11 // pred_check_branch
          %206 = sbr.rel (%p204) target = $region20
        $region19: #{tpu_custom_call.1} parent=11 // pred_region
          _
        $region20: #{tpu_custom_call.1} parent=11 // pred_fallthru
          _
      $region12: #{tpu_custom_call.1} parent=5 // pred_fallthru
        _
      %p207 = scmp.lt.s32.totalorder %s19, 3
      // Predicated region
      $region21: #{tpu_custom_call.1} parent=5 // pred_check
        %p208 = pneg %p207
      $region22: #{tpu_custom_call.1} parent=5 // pred_check_branch
        %210 = sbr.rel (%p208) target = $region24
      $region23: #{tpu_custom_call.1} parent=5 // pred_region
        // Predicated region
        $region25: #{tpu_custom_call.1} parent=23 // pred_check
          %p211 = pneg %p81
        $region26: #{tpu_custom_call.1} parent=23 // pred_check_branch
          %213 = sbr.rel (%p211) target = $region28
        $region27: #{tpu_custom_call.1} parent=23 // pred_region
          %s214 = sand.u32 %s71, 1
          %s215 = scalar_lea.sflag [#allocation3], %s214
          %s216 = sand.u32 %s71, 1
          %s217 = smul.addr %s216, 256
          %s218 = scalar_lea.vmem [#allocation2], %s217
          %s220 = ssub.s32 4096, 4096
          %221 = vsyncadd %s215, %s220
          %s222 = smul.addr %s19, 32
          %s223 = smul.addr %s222, 128
          %s224 = scalar_lea.hbm %s2, %s223
          %s225 = sshll.u32 %s218, 4
          %s226 = int_to_ptr.vmem [resolvable:$true] %s225
          %231 = dma.hbm_to_vmem [thread:$0]  %s224, 4096, %s226, %s215, 512, 512, 32
        $region28: #{tpu_custom_call.1} parent=23 // pred_fallthru
          _
        // Predicated region
        $region29: #{tpu_custom_call.1} parent=23 // pred_check
          %p232 = pneg %p107
        $region30: #{tpu_custom_call.1} parent=23 // pred_check_branch
          %234 = sbr.rel (%p232) target = $region32
        $region31: #{tpu_custom_call.1} parent=23 // pred_region
          %p235 = scmp.lt.s32.totalorder %s19, 2
          %s236 = scalar_select %p235, %s19, 2
          %s237 = smul.addr %s236, 4
          %s238 = scalar_lea.vmem %s3, %s237
        $region32: #{tpu_custom_call.1} parent=23 // pred_fallthru
          _
        // Predicated region
        $region33: #{tpu_custom_call.1} parent=23 // pred_check
          %p239 = pneg %p133
        $region34: #{tpu_custom_call.1} parent=23 // pred_check_branch
          %241 = sbr.rel (%p239) target = $region36
        $region35: #{tpu_custom_call.1} parent=23 // pred_region
          %s242 = sand.u32 %s123, 1
          %s243 = scalar_lea.sflag [#allocation6], %s242
          %s244 = sand.u32 %s123, 1
          %s245 = smul.addr %s244, 512
          %s246 = scalar_lea.vmem [#allocation5], %s245
          %s248 = ssub.s32 8192, 8192
          %249 = vsyncadd %s243, %s248
          %s250 = smul.addr %s19, 64
          %s251 = smul.addr %s250, 128
          %s252 = scalar_lea.hbm %s4, %s251
          %s253 = sshll.u32 %s246, 4
          %s254 = int_to_ptr.vmem [resolvable:$true] %s253
          %259 = dma.hbm_to_vmem [thread:$0]  %s252, 8192, %s254, %s243, 128, 128, 8
        $region36: #{tpu_custom_call.1} parent=23 // pred_fallthru
          _
        // Predicated region
        $region37: #{tpu_custom_call.1} parent=23 // pred_check
          %p260 = pneg %p159
        $region38: #{tpu_custom_call.1} parent=23 // pred_check_branch
          %262 = sbr.rel (%p260) target = $region40
        $region39: #{tpu_custom_call.1} parent=23 // pred_region
          %p263 = scmp.lt.s32.totalorder %s19, 2
          %s264 = scalar_select %p263, %s19, 2
          %s265 = scalar_lea.vmem %s5, %s264
        $region40: #{tpu_custom_call.1} parent=23 // pred_fallthru
          _
      $region24: #{tpu_custom_call.1} parent=5 // pred_fallthru
        _
      %p266 = scmp.le.s32.totalorder 1, %s19
      %p267 = scmp.lt.s32.totalorder %s19, 4
      %p268 = pnand %p266, %p267
      %p269 = pneg %p268
      // Predicated region
      $region41: #{tpu_custom_call.1} parent=5 // pred_check
        _
      $region42: #{tpu_custom_call.1} parent=5 // pred_check_branch
        %271 = sbr.rel (%p268) target = $region44
      $region43: #{tpu_custom_call.1} parent=5 // pred_region
        %s272 = ssub.s32 %s19, 1
        %s273 = sand.u32 %s74, 1
        %s274 = scalar_lea.sflag [#allocation3], %s273
        %s275 = sand.u32 %s74, 1
        %s276 = smul.addr %s275, 256
        %s277 = scalar_lea.vmem [#allocation2], %s276
        // Predicated region
        $region45: #{tpu_custom_call.1} parent=43 // pred_check
          %p278 = pneg %p87
        $region46: #{tpu_custom_call.1} parent=43 // pred_check_branch
          %280 = sbr.rel (%p278) target = $region48
        $region47: #{tpu_custom_call.1} parent=43 // pred_region
          %281 = dma.done %s274, 4096
        $region48: #{tpu_custom_call.1} parent=43 // pred_fallthru
          _
        %s282 = sand.u32 %s126, 1
        %s283 = scalar_lea.sflag [#allocation6], %s282
        %s284 = sand.u32 %s126, 1
        %s285 = smul.addr %s284, 512
        %s286 = scalar_lea.vmem [#allocation5], %s285
        // Predicated region
        $region49: #{tpu_custom_call.1} parent=43 // pred_check
          %p287 = pneg %p139
        $region50: #{tpu_custom_call.1} parent=43 // pred_check_branch
          %289 = sbr.rel (%p287) target = $region52
        $region51: #{tpu_custom_call.1} parent=43 // pred_region
          %290 = dma.done %s283, 8192
        $region52: #{tpu_custom_call.1} parent=43 // pred_fallthru
          _
        %p291 = pneg %p40
        %p292 = pneg %p37
        %p293 = pneg %p61
        %p294 = pneg %p58
        %s295 = sand.u32 %s74, 1
        %s296 = scalar_lea.sflag [#allocation3], %s295
        %s297 = sand.u32 %s74, 1
        %s298 = smul.addr %s297, 256
        %s299 = scalar_lea.vmem [#allocation2], %s298
        %p300 = pneg %p87
        %p301 = pneg %p84
        %p302 = scmp.lt.s32.totalorder %s24, 2
        %s303 = scalar_select %p302, %s24, 2
        %s304 = smul.addr %s303, 4
        %s305 = scalar_lea.vmem %s3, %s304
        %p306 = pneg %p113
        %p307 = pneg %p110
        %s308 = sand.u32 %s126, 1
        %s309 = scalar_lea.sflag [#allocation6], %s308
        %s310 = sand.u32 %s126, 1
        %s311 = smul.addr %s310, 512
        %s312 = scalar_lea.vmem [#allocation5], %s311
        %p313 = pneg %p139
        %p314 = pneg %p136
        %p315 = scmp.lt.s32.totalorder %s24, 2
        %s316 = scalar_select %p315, %s24, 2
        %s317 = scalar_lea.vmem %s5, %s316
        %p318 = pneg %p165
        %p319 = pneg %p162
        %p320 = pneg %p186
        %p321 = pneg %p183
        %p322 = scmp.lt.s32.totalorder %s24, 2
        %s323 = scalar_select %p322, %s24, 2
        %s324 = smul.addr %s323, 4
        %s325 = scalar_lea.vmem %s3, %s324
        %p326 = scmp.lt.s32.totalorder %s24, 2
        %s327 = scalar_select %p326, %s24, 2
        %s328 = scalar_lea.vmem %s5, %s327
        %p329 = scmp.eq.s32.totalorder %s24, 0
        // Predicated region
        $region53: #{tpu_custom_call.1} parent=43 // pred_check
          %p330 = pneg %p329
        $region54: #{tpu_custom_call.1} parent=43 // pred_check_branch
          %332 = sbr.rel (%p330) target = $region56
        $region55: #{tpu_custom_call.1} parent=43 // pred_region
          %333 = vst [vmem:[#allocation7] sm:$0xff] 0.0
        $region56: #{tpu_custom_call.1} parent=43 // pred_fallthru
          _
        %v334 = vld [vmem:[%s1] sm:$0xff]
        %v335 = vld [vmem:[%s277] sm:$0xff]
        %v336 = vld [vmem:[%s277 + $0x8] sm:$0xff]
        %v337 = vld [vmem:[%s277 + $0x10] sm:$0xff]
        %v338 = vld [vmem:[%s277 + $0x18] sm:$0xff]
        %v339 = vld [vmem:[%s277 + $0x20] sm:$0xff]
        %v340 = vld [vmem:[%s277 + $0x28] sm:$0xff]
        %v341 = vld [vmem:[%s277 + $0x30] sm:$0xff]
        %v342 = vld [vmem:[%s277 + $0x38] sm:$0xff]
        %v343 = vld [vmem:[%s277 + $0x40] sm:$0xff]
        %v344 = vld [vmem:[%s277 + $0x48] sm:$0xff]
        %v345 = vld [vmem:[%s277 + $0x50] sm:$0xff]
        %v346 = vld [vmem:[%s277 + $0x58] sm:$0xff]
        %v347 = vld [vmem:[%s277 + $0x60] sm:$0xff]
        %v348 = vld [vmem:[%s277 + $0x68] sm:$0xff]
        %v349 = vld [vmem:[%s277 + $0x70] sm:$0xff]
        %v350 = vld [vmem:[%s277 + $0x78] sm:$0xff]
        %v351 = vld [vmem:[%s277 + $0x80] sm:$0xff]
        %v352 = vld [vmem:[%s277 + $0x88] sm:$0xff]
        %v353 = vld [vmem:[%s277 + $0x90] sm:$0xff]
        %v354 = vld [vmem:[%s277 + $0x98] sm:$0xff]
        %v355 = vld [vmem:[%s277 + $0xa0] sm:$0xff]
        %v356 = vld [vmem:[%s277 + $0xa8] sm:$0xff]
        %v357 = vld [vmem:[%s277 + $0xb0] sm:$0xff]
        %v358 = vld [vmem:[%s277 + $0xb8] sm:$0xff]
        %v359 = vld [vmem:[%s277 + $0xc0] sm:$0xff]
        %v360 = vld [vmem:[%s277 + $0xc8] sm:$0xff]
        %v361 = vld [vmem:[%s277 + $0xd0] sm:$0xff]
        %v362 = vld [vmem:[%s277 + $0xd8] sm:$0xff]
        %v363 = vld [vmem:[%s277 + $0xe0] sm:$0xff]
        %v364 = vld [vmem:[%s277 + $0xe8] sm:$0xff]
        %v365 = vld [vmem:[%s277 + $0xf0] sm:$0xff]
        %v366 = vld [vmem:[%s277 + $0xf8] sm:$0xff]
        %v367 = vld [vmem:[%s325] sm:$0xf]
        %v369 = vlaneseq
        %v370 = vshrl.u32 %v369, 7
        %v371 = vsub.s32 0, %v370
        %v372 = vrot.slane %v367, %v371
        %v373 = vlaneseq
        %v374 = vshrl.u32 %v373, 7
        %v375 = vsub.s32 1, %v374
        %v376 = vrot.slane %v367, %v375
        %v377 = vlaneseq
        %v378 = vshrl.u32 %v377, 7
        %v379 = vsub.s32 2, %v378
        %v380 = vrot.slane %v367, %v379
        %v381 = vlaneseq
        %v382 = vshrl.u32 %v381, 7
        %v383 = vsub.s32 3, %v382
        %v384 = vrot.slane %v367, %v383
        %vm389 = vcmask 523264
        %v391 = vsel %vm389, %v334, 0
        %393 = vmatprep.subr.mxu0 %v336
        %394 = vmatpush1.msra.mxu0 %v335
        %395 = vmatprep.subr.mxu0 %v340
        %396 = vmatpush1.msra.mxu0 %v339
        %397 = vmatprep.subr.mxu0 %v344
        %398 = vmatpush1.msra.mxu0 %v343
        %399 = vmatprep.subr.mxu0 %v348
        %400 = vmatpush1.msra.mxu0 %v347
        %401 = vmatprep.subr.mxu0 %v352
        %402 = vmatpush1.msra.mxu0 %v351
        %403 = vmatprep.subr.mxu0 %v356
        %404 = vmatpush1.msra.mxu0 %v355
        %405 = vmatprep.subr.mxu0 %v360
        %406 = vmatpush1.msra.mxu0 %v359
        %407 = vmatprep.subr.mxu0 %v364
        %408 = vmatpush1.msra.mxu0 %v363
        %409 = vmatprep.subr.mxu0 0.0
        %410 = vmatpush1.msra.mxu0 0.0
        %411 = vmatprep.subr.mxu0 0.0
        %412 = vmatpush1.msra.mxu0 0.0
        %413 = vmatprep.subr.mxu0 0.0
        %414 = vmatpush1.msra.mxu0 0.0
        %415 = vmatprep.subr.mxu0 0.0
        %416 = vmatpush1.msra.mxu0 0.0
        %417 = vmatprep.subr.mxu0 0.0
        %418 = vmatpush1.msra.mxu0 0.0
        %419 = vmatprep.subr.mxu0 0.0
        %420 = vmatpush1.msra.mxu0 0.0
        %421 = vmatprep.subr.mxu0 0.0
        %422 = vmatpush1.msra.mxu0 0.0
        %423 = vmatprep.subr.mxu0 0.0
        %424 = vmatpush1.msra.mxu0 0.0
        %425 = vmatprep.subr.mxu0 0.0
        %426 = vmatpush1.msra.mxu0 0.0
        %427 = vmatprep.subr.mxu0 0.0
        %428 = vmatpush1.msra.mxu0 0.0
        %429 = vmatprep.subr.mxu0 0.0
        %430 = vmatpush1.msra.mxu0 0.0
        %431 = vmatprep.subr.mxu0 0.0
        %432 = vmatpush1.msra.mxu0 0.0
        %433 = vmatprep.subr.mxu0 0.0
        %434 = vmatpush1.msra.mxu0 0.0
        %435 = vmatprep.subr.mxu0 0.0
        %436 = vmatpush1.msra.mxu0 0.0
        %437 = vmatprep.subr.mxu0 0.0
        %438 = vmatpush1.msra.mxu0 0.0
        %439 = vmatprep.subr.mxu0 0.0
        %440 = vmatpush1.msra.mxu0 0.0
        %441 = vmatprep.subr.mxu0 0.0
        %442 = vmatpush1.msra.mxu0 0.0
        %443 = vmatprep.subr.mxu0 0.0
        %444 = vmatpush1.msra.mxu0 0.0
        %445 = vmatprep.subr.mxu0 0.0
        %446 = vmatpush1.msra.mxu0 0.0
        %447 = vmatprep.subr.mxu0 0.0
        %448 = vmatpush1.msra.mxu0 0.0
        %449 = vmatprep.subr.mxu0 0.0
        %450 = vmatpush1.msra.mxu0 0.0
        %451 = vmatprep.subr.mxu0 0.0
        %452 = vmatpush1.msra.mxu0 0.0
        %453 = vmatprep.subr.mxu0 0.0
        %454 = vmatpush1.msra.mxu0 0.0
        %455 = vmatprep.subr.mxu0 0.0
        %456 = vmatpush1.msra.mxu0 0.0
        %457 = vmatprep.mubr.f32.mxu0 0.0
        %458 = vmatmul.mubr.f32.gmra.mrb[0].mxu0 %v391
        %v459 = vpop.f32.mrb[0].mxu0
        %v460 = vadd.f32 %v372, %v459
        %v461 = vpop.f32.mrb[0].mxu0
        %v462 = vadd.f32 %v376, %v461
        %463 = vdwg.mxu0
        %464 = vmatprep.subr.mxu0 %v338
        %465 = vmatpush1.msra.mxu0 %v337
        %466 = vmatprep.subr.mxu0 %v342
        %467 = vmatpush1.msra.mxu0 %v341
        %468 = vmatprep.subr.mxu0 %v346
        %469 = vmatpush1.msra.mxu0 %v345
        %470 = vmatprep.subr.mxu0 %v350
        %471 = vmatpush1.msra.mxu0 %v349
        %472 = vmatprep.subr.mxu0 %v354
        %473 = vmatpush1.msra.mxu0 %v353
        %474 = vmatprep.subr.mxu0 %v358
        %475 = vmatpush1.msra.mxu0 %v357
        %476 = vmatprep.subr.mxu0 %v362
        %477 = vmatpush1.msra.mxu0 %v361
        %478 = vmatprep.subr.mxu0 %v366
        %479 = vmatpush1.msra.mxu0 %v365
        %480 = vmatprep.subr.mxu0 0.0
        %481 = vmatpush1.msra.mxu0 0.0
        %482 = vmatprep.subr.mxu0 0.0
        %483 = vmatpush1.msra.mxu0 0.0
        %484 = vmatprep.subr.mxu0 0.0
        %485 = vmatpush1.msra.mxu0 0.0
        %486 = vmatprep.subr.mxu0 0.0
        %487 = vmatpush1.msra.mxu0 0.0
        %488 = vmatprep.subr.mxu0 0.0
        %489 = vmatpush1.msra.mxu0 0.0
        %490 = vmatprep.subr.mxu0 0.0
        %491 = vmatpush1.msra.mxu0 0.0
        %492 = vmatprep.subr.mxu0 0.0
        %493 = vmatpush1.msra.mxu0 0.0
        %494 = vmatprep.subr.mxu0 0.0
        %495 = vmatpush1.msra.mxu0 0.0
        %496 = vmatprep.subr.mxu0 0.0
        %497 = vmatpush1.msra.mxu0 0.0
        %498 = vmatprep.subr.mxu0 0.0
        %499 = vmatpush1.msra.mxu0 0.0
        %500 = vmatprep.subr.mxu0 0.0
        %501 = vmatpush1.msra.mxu0 0.0
        %502 = vmatprep.subr.mxu0 0.0
        %503 = vmatpush1.msra.mxu0 0.0
        %504 = vmatprep.subr.mxu0 0.0
        %505 = vmatpush1.msra.mxu0 0.0
        %506 = vmatprep.subr.mxu0 0.0
        %507 = vmatpush1.msra.mxu0 0.0
        %508 = vmatprep.subr.mxu0 0.0
        %509 = vmatpush1.msra.mxu0 0.0
        %510 = vmatprep.subr.mxu0 0.0
        %511 = vmatpush1.msra.mxu0 0.0
        %512 = vmatprep.subr.mxu0 0.0
        %513 = vmatpush1.msra.mxu0 0.0
        %514 = vmatprep.subr.mxu0 0.0
        %515 = vmatpush1.msra.mxu0 0.0
        %516 = vmatprep.subr.mxu0 0.0
        %517 = vmatpush1.msra.mxu0 0.0
        %518 = vmatprep.subr.mxu0 0.0
        %519 = vmatpush1.msra.mxu0 0.0
        %520 = vmatprep.subr.mxu0 0.0
        %521 = vmatpush1.msra.mxu0 0.0
        %522 = vmatprep.subr.mxu0 0.0
        %523 = vmatpush1.msra.mxu0 0.0
        %524 = vmatprep.subr.mxu0 0.0
        %525 = vmatpush1.msra.mxu0 0.0
        %526 = vmatprep.subr.mxu0 0.0
        %527 = vmatpush1.msra.mxu0 0.0
        %528 = vmatprep.mubr.f32.mxu0 0.0
        %529 = vmatmul.mubr.f32.gmra.mrb[0].mxu0 %v391
        %v530 = vpop.f32.mrb[0].mxu0
        %v531 = vadd.f32 %v380, %v530
        %v532 = vpop.f32.mrb[0].mxu0
        %v533 = vadd.f32 %v384, %v532
        %534 = vdwg.mxu0
        %v535 = vmax.f32 %v460, 0.0
        %v536 = vmax.f32 %v462, 0.0
        %v537 = vmax.f32 %v531, 0.0
        %v538 = vmax.f32 %v533, 0.0
        %v539 = vld [vmem:[%s286] sm:$0xff]
        %v540 = vld [vmem:[%s286 + $0x8] sm:$0xff]
        %v541 = vld [vmem:[%s286 + $0x10] sm:$0xff]
        %v542 = vld [vmem:[%s286 + $0x18] sm:$0xff]
        %v543 = vld [vmem:[%s286 + $0x20] sm:$0xff]
        %v544 = vld [vmem:[%s286 + $0x28] sm:$0xff]
        %v545 = vld [vmem:[%s286 + $0x30] sm:$0xff]
        %v546 = vld [vmem:[%s286 + $0x38] sm:$0xff]
        %v547 = vld [vmem:[%s286 + $0x40] sm:$0xff]
        %v548 = vld [vmem:[%s286 + $0x48] sm:$0xff]
        %v549 = vld [vmem:[%s286 + $0x50] sm:$0xff]
        %v550 = vld [vmem:[%s286 + $0x58] sm:$0xff]
        %v551 = vld [vmem:[%s286 + $0x60] sm:$0xff]
        %v552 = vld [vmem:[%s286 + $0x68] sm:$0xff]
        %v553 = vld [vmem:[%s286 + $0x70] sm:$0xff]
        %v554 = vld [vmem:[%s286 + $0x78] sm:$0xff]
        %v555 = vld [vmem:[%s286 + $0x80] sm:$0xff]
        %v556 = vld [vmem:[%s286 + $0x88] sm:$0xff]
        %v557 = vld [vmem:[%s286 + $0x90] sm:$0xff]
        %v558 = vld [vmem:[%s286 + $0x98] sm:$0xff]
        %v559 = vld [vmem:[%s286 + $0xa0] sm:$0xff]
        %v560 = vld [vmem:[%s286 + $0xa8] sm:$0xff]
        %v561 = vld [vmem:[%s286 + $0xb0] sm:$0xff]
        %v562 = vld [vmem:[%s286 + $0xb8] sm:$0xff]
        %v563 = vld [vmem:[%s286 + $0xc0] sm:$0xff]
        %v564 = vld [vmem:[%s286 + $0xc8] sm:$0xff]
        %v565 = vld [vmem:[%s286 + $0xd0] sm:$0xff]
        %v566 = vld [vmem:[%s286 + $0xd8] sm:$0xff]
        %v567 = vld [vmem:[%s286 + $0xe0] sm:$0xff]
        %v568 = vld [vmem:[%s286 + $0xe8] sm:$0xff]
        %v569 = vld [vmem:[%s286 + $0xf0] sm:$0xff]
        %v570 = vld [vmem:[%s286 + $0xf8] sm:$0xff]
        %v571 = vld [vmem:[%s286 + $0x100] sm:$0xff]
        %v572 = vld [vmem:[%s286 + $0x108] sm:$0xff]
        %v573 = vld [vmem:[%s286 + $0x110] sm:$0xff]
        %v574 = vld [vmem:[%s286 + $0x118] sm:$0xff]
        %v575 = vld [vmem:[%s286 + $0x120] sm:$0xff]
        %v576 = vld [vmem:[%s286 + $0x128] sm:$0xff]
        %v577 = vld [vmem:[%s286 + $0x130] sm:$0xff]
        %v578 = vld [vmem:[%s286 + $0x138] sm:$0xff]
        %v579 = vld [vmem:[%s286 + $0x140] sm:$0xff]
        %v580 = vld [vmem:[%s286 + $0x148] sm:$0xff]
        %v581 = vld [vmem:[%s286 + $0x150] sm:$0xff]
        %v582 = vld [vmem:[%s286 + $0x158] sm:$0xff]
        %v583 = vld [vmem:[%s286 + $0x160] sm:$0xff]
        %v584 = vld [vmem:[%s286 + $0x168] sm:$0xff]
        %v585 = vld [vmem:[%s286 + $0x170] sm:$0xff]
        %v586 = vld [vmem:[%s286 + $0x178] sm:$0xff]
        %v587 = vld [vmem:[%s286 + $0x180] sm:$0xff]
        %v588 = vld [vmem:[%s286 + $0x188] sm:$0xff]
        %v589 = vld [vmem:[%s286 + $0x190] sm:$0xff]
        %v590 = vld [vmem:[%s286 + $0x198] sm:$0xff]
        %v591 = vld [vmem:[%s286 + $0x1a0] sm:$0xff]
        %v592 = vld [vmem:[%s286 + $0x1a8] sm:$0xff]
        %v593 = vld [vmem:[%s286 + $0x1b0] sm:$0xff]
        %v594 = vld [vmem:[%s286 + $0x1b8] sm:$0xff]
        %v595 = vld [vmem:[%s286 + $0x1c0] sm:$0xff]
        %v596 = vld [vmem:[%s286 + $0x1c8] sm:$0xff]
        %v597 = vld [vmem:[%s286 + $0x1d0] sm:$0xff]
        %v598 = vld [vmem:[%s286 + $0x1d8] sm:$0xff]
        %v599 = vld [vmem:[%s286 + $0x1e0] sm:$0xff]
        %v600 = vld [vmem:[%s286 + $0x1e8] sm:$0xff]
        %v601 = vld [vmem:[%s286 + $0x1f0] sm:$0xff]
        %v602 = vld [vmem:[%s286 + $0x1f8] sm:$0xff]
        %v603 = vld [vmem:[%s328] sm:$0x1]
        %v605 = vlaneseq
        %v606 = vshrl.u32 %v605, 7
        %v607 = vsub.s32 0, %v606
        %v608 = vrot.slane %v603, %v607
        %610 = vmatprep.subr.mxu0 0.0
        %611 = vmatpush1.msra.mxu0 %v539
        %612 = vmatprep.subr.mxu0 0.0
        %613 = vmatpush1.msra.mxu0 %v540
        %614 = vmatprep.subr.mxu0 0.0
        %615 = vmatpush1.msra.mxu0 %v541
        %616 = vmatprep.subr.mxu0 0.0
        %617 = vmatpush1.msra.mxu0 %v542
        %618 = vmatprep.subr.mxu0 0.0
        %619 = vmatpush1.msra.mxu0 %v543
        %620 = vmatprep.subr.mxu0 0.0
        %621 = vmatpush1.msra.mxu0 %v544
        %622 = vmatprep.subr.mxu0 0.0
        %623 = vmatpush1.msra.mxu0 %v545
        %624 = vmatprep.subr.mxu0 0.0
        %625 = vmatpush1.msra.mxu0 %v546
        %626 = vmatprep.subr.mxu0 0.0
        %627 = vmatpush1.msra.mxu0 %v547
        %628 = vmatprep.subr.mxu0 0.0
        %629 = vmatpush1.msra.mxu0 %v548
        %630 = vmatprep.subr.mxu0 0.0
        %631 = vmatpush1.msra.mxu0 %v549
        %632 = vmatprep.subr.mxu0 0.0
        %633 = vmatpush1.msra.mxu0 %v550
        %634 = vmatprep.subr.mxu0 0.0
        %635 = vmatpush1.msra.mxu0 %v551
        %636 = vmatprep.subr.mxu0 0.0
        %637 = vmatpush1.msra.mxu0 %v552
        %638 = vmatprep.subr.mxu0 0.0
        %639 = vmatpush1.msra.mxu0 %v553
        %640 = vmatprep.subr.mxu0 0.0
        %641 = vmatpush1.msra.mxu0 %v554
        %642 = vmatprep.subr.mxu0 0.0
        %643 = vmatpush1.msra.mxu0 %v555
        %644 = vmatprep.subr.mxu0 0.0
        %645 = vmatpush1.msra.mxu0 %v556
        %646 = vmatprep.subr.mxu0 0.0
        %647 = vmatpush1.msra.mxu0 %v557
        %648 = vmatprep.subr.mxu0 0.0
        %649 = vmatpush1.msra.mxu0 %v558
        %650 = vmatprep.subr.mxu0 0.0
        %651 = vmatpush1.msra.mxu0 %v559
        %652 = vmatprep.subr.mxu0 0.0
        %653 = vmatpush1.msra.mxu0 %v560
        %654 = vmatprep.subr.mxu0 0.0
        %655 = vmatpush1.msra.mxu0 %v561
        %656 = vmatprep.subr.mxu0 0.0
        %657 = vmatpush1.msra.mxu0 %v562
        %658 = vmatprep.subr.mxu0 0.0
        %659 = vmatpush1.msra.mxu0 %v563
        %660 = vmatprep.subr.mxu0 0.0
        %661 = vmatpush1.msra.mxu0 %v564
        %662 = vmatprep.subr.mxu0 0.0
        %663 = vmatpush1.msra.mxu0 %v565
        %664 = vmatprep.subr.mxu0 0.0
        %665 = vmatpush1.msra.mxu0 %v566
        %666 = vmatprep.subr.mxu0 0.0
        %667 = vmatpush1.msra.mxu0 %v567
        %668 = vmatprep.subr.mxu0 0.0
        %669 = vmatpush1.msra.mxu0 %v568
        %670 = vmatprep.subr.mxu0 0.0
        %671 = vmatpush1.msra.mxu0 %v569
        %672 = vmatprep.subr.mxu0 0.0
        %673 = vmatpush1.msra.mxu0 %v570
        %674 = vmatprep.mubr.f32.mxu0 %v536
        %675 = vmatmul.mubr.f32.gmra.mrb[0].mxu0 %v535
        %v676 = vpop.f32.mrb[0].mxu0
        %v677 = vadd.f32 %v608, %v676
        %v678 = vpop.f32.mrb[0].mxu0
        %679 = vdwg.mxu0
        %680 = vmatprep.subr.mxu0 0.0
        %681 = vmatpush1.msra.mxu0 %v571
        %682 = vmatprep.subr.mxu0 0.0
        %683 = vmatpush1.msra.mxu0 %v572
        %684 = vmatprep.subr.mxu0 0.0
        %685 = vmatpush1.msra.mxu0 %v573
        %686 = vmatprep.subr.mxu0 0.0
        %687 = vmatpush1.msra.mxu0 %v574
        %688 = vmatprep.subr.mxu0 0.0
        %689 = vmatpush1.msra.mxu0 %v575
        %690 = vmatprep.subr.mxu0 0.0
        %691 = vmatpush1.msra.mxu0 %v576
        %692 = vmatprep.subr.mxu0 0.0
        %693 = vmatpush1.msra.mxu0 %v577
        %694 = vmatprep.subr.mxu0 0.0
        %695 = vmatpush1.msra.mxu0 %v578
        %696 = vmatprep.subr.mxu0 0.0
        %697 = vmatpush1.msra.mxu0 %v579
        %698 = vmatprep.subr.mxu0 0.0
        %699 = vmatpush1.msra.mxu0 %v580
        %700 = vmatprep.subr.mxu0 0.0
        %701 = vmatpush1.msra.mxu0 %v581
        %702 = vmatprep.subr.mxu0 0.0
        %703 = vmatpush1.msra.mxu0 %v582
        %704 = vmatprep.subr.mxu0 0.0
        %705 = vmatpush1.msra.mxu0 %v583
        %706 = vmatprep.subr.mxu0 0.0
        %707 = vmatpush1.msra.mxu0 %v584
        %708 = vmatprep.subr.mxu0 0.0
        %709 = vmatpush1.msra.mxu0 %v585
        %710 = vmatprep.subr.mxu0 0.0
        %711 = vmatpush1.msra.mxu0 %v586
        %712 = vmatprep.subr.mxu0 0.0
        %713 = vmatpush1.msra.mxu0 %v587
        %714 = vmatprep.subr.mxu0 0.0
        %715 = vmatpush1.msra.mxu0 %v588
        %716 = vmatprep.subr.mxu0 0.0
        %717 = vmatpush1.msra.mxu0 %v589
        %718 = vmatprep.subr.mxu0 0.0
        %719 = vmatpush1.msra.mxu0 %v590
        %720 = vmatprep.subr.mxu0 0.0
        %721 = vmatpush1.msra.mxu0 %v591
        %722 = vmatprep.subr.mxu0 0.0
        %723 = vmatpush1.msra.mxu0 %v592
        %724 = vmatprep.subr.mxu0 0.0
        %725 = vmatpush1.msra.mxu0 %v593
        %726 = vmatprep.subr.mxu0 0.0
        %727 = vmatpush1.msra.mxu0 %v594
        %728 = vmatprep.subr.mxu0 0.0
        %729 = vmatpush1.msra.mxu0 %v595
        %730 = vmatprep.subr.mxu0 0.0
        %731 = vmatpush1.msra.mxu0 %v596
        %732 = vmatprep.subr.mxu0 0.0
        %733 = vmatpush1.msra.mxu0 %v597
        %734 = vmatprep.subr.mxu0 0.0
        %735 = vmatpush1.msra.mxu0 %v598
        %736 = vmatprep.subr.mxu0 0.0
        %737 = vmatpush1.msra.mxu0 %v599
        %738 = vmatprep.subr.mxu0 0.0
        %739 = vmatpush1.msra.mxu0 %v600
        %740 = vmatprep.subr.mxu0 0.0
        %741 = vmatpush1.msra.mxu0 %v601
        %742 = vmatprep.subr.mxu0 0.0
        %743 = vmatpush1.msra.mxu0 %v602
        %744 = vmatprep.mubr.f32.mxu0 %v538
        %745 = vmatmul.mubr.f32.gmra.mrb[0].mxu0 %v537
        %v746 = vpop.f32.mrb[0].mxu0
        %v747 = vadd.f32 %v677, %v746
        %v748 = vpop.f32.mrb[0].mxu0
        %749 = vdwg.mxu0
        %v750 = vld [vmem:[%s0] sm:$0xff]
        %v751 = vstv %s24
        %vm752 = vcmp.eq.s32.totalorder %v750, %v751
        %v753 = vld [vmem:[#allocation7] sm:$0xff]
        %v754 = vsel %vm752, 1, 0
        %755 = vset.pattern.permute.xlu0 0
        %756 = vperm.xlu0 %755, %v754
        %v757 = vpop.permute.xlu0 %756
        %vm758 = vcmp.eq.s32.totalorder %v757, 1
        %v759 = vsel %vm758, %v747, %v753
        %760 = vst [vmem:[#allocation7] sm:$0xff] %v759
        // Predicated region
        $region57: #{tpu_custom_call.1} parent=43 // pred_check
          %p761 = pneg %p183
        $region58: #{tpu_custom_call.1} parent=43 // pred_check_branch
          %763 = sbr.rel (%p761) target = $region60
        $region59: #{tpu_custom_call.1} parent=43 // pred_region
          %s765 = ssub.s32 128, 128
          %766 = vsyncadd [#allocation4], %s765
          %s768 = sshll.u32 [#allocation7], 4
          %s769 = int_to_ptr.vmem [resolvable:$true] %s768
          %771 = dma.vmem_to_hbm [thread:$0]  %s769, 128, %s6, [#allocation4]
        $region60: #{tpu_custom_call.1} parent=43 // pred_fallthru
          _
        // Predicated region
        $region61: #{tpu_custom_call.1} parent=43 // pred_check
          %p772 = pneg %p183
        $region62: #{tpu_custom_call.1} parent=43 // pred_check_branch
          %774 = sbr.rel (%p772) target = $region64
        $region63: #{tpu_custom_call.1} parent=43 // pred_region
          %775 = dma.done [#allocation4], 128
        $region64: #{tpu_custom_call.1} parent=43 // pred_fallthru
          _
      $region44: #{tpu_custom_call.1} parent=5 // pred_fallthru
        _
      %p776 = scmp.le.s32.totalorder 2, %s19
      // Predicated region
      $region65: #{tpu_custom_call.1} parent=5 // pred_check
        %p777 = pneg %p776
      $region66: #{tpu_custom_call.1} parent=5 // pred_check_branch
        %779 = sbr.rel (%p777) target = $region68
      $region67: #{tpu_custom_call.1} parent=5 // pred_region
        %s780 = ssub.s32 %s19, 2
      $region68: #{tpu_custom_call.1} parent=5 // pred_fallthru
        _
    $region6: #{tpu_custom_call.1} parent=1 // loop_footer
      %s23 = sadd.s32 1, %s19
    $region7: #{tpu_custom_call.1} parent=1 // loop_footer_branch
      %18 = sbr.rel target = $region3
    $region8: #{tpu_custom_call.1} parent=1 // loop_exit
      _
    %781 = vsyncpa [#allocation3], 1
    %s782 = scalar_lea.sflag [#allocation3], 1
    %783 = vsyncpa %s782, 1
    %784 = vsyncpa [#allocation6], 1
    %s785 = scalar_lea.sflag [#allocation6], 1
    %786 = vsyncpa %s785, 1
    %787 = vsyncpa [#allocation4], 1
    %s788 = scalar_lea.sflag [#allocation4], 1
    %789 = vsyncpa %s788, 1

</llo_original>
